<compile_context>
chip_gen: v6e
topology: v6e:2x2x1
jax: 0.10.0
libtpu: 0.0.40
codegen_flags: <defaults>
</compile_context>

<pallas_src>
import jax
import jax.numpy as jnp
from jax.experimental import pallas as pl
from jax.experimental.pallas import tpu as pltpu


def _identity_kernel(x_ref, o_ref):
    # Pure copy of the current VMEM tile.
    o_ref[...] = x_ref[...]


_SMALL_BYTES = 4 * 1024 * 1024         # single full-array block below this
_TARGET_BLOCK_BYTES = 2 * 1024 * 1024  # ~2 MiB tiles for the gridded path
_LANE_CANDIDATES = (8192, 4096, 2048, 1024, 512, 256, 128)


def _copy_small(x: jax.Array) -> jax.Array:
    """Whole array as one VMEM block: no grid, no padding, no reshapes."""
    nbytes = x.size * x.dtype.itemsize
    return pl.pallas_call(
        _identity_kernel,
        out_shape=jax.ShapeDtypeStruct(x.shape, x.dtype),
        input_output_aliases={0: 0},
        cost_estimate=pl.CostEstimate(
            flops=0, transcendentals=0, bytes_accessed=2 * nbytes),
    )(x)


def _copy_tiled_2d(x2d: jax.Array) -> jax.Array:
    """Tiled copy of a lane-dense (rows, lanes) slab; lanes % 128 == 0."""
    rows, lanes = x2d.shape
    itemsize = x2d.dtype.itemsize
    nbytes = rows * lanes * itemsize

    # ~2 MiB blocks; row count a multiple of 32 (covers the sublane minimum
    # for f32 / bf16 / int8).  Ragged last block is handled by Pallas.
    block_rows = max(32, (_TARGET_BLOCK_BYTES // (lanes * itemsize)) // 32 * 32)
    grid = (pl.cdiv(rows, block_rows),)

    return pl.pallas_call(
        _identity_kernel,
        out_shape=jax.ShapeDtypeStruct((rows, lanes), x2d.dtype),
        grid=grid,
        in_specs=[pl.BlockSpec((block_rows, lanes), lambda i: (i, 0))],
        out_specs=pl.BlockSpec((block_rows, lanes), lambda i: (i, 0)),
        input_output_aliases={0: 0},
        cost_estimate=pl.CostEstimate(
            flops=0, transcendentals=0, bytes_accessed=2 * nbytes),
        compiler_params=pltpu.CompilerParams(
            dimension_semantics=("parallel",)),
    )(x2d)


def identity(x: jax.Array) -> jax.Array:
    """Identity mapping (PyTorch Identity.forward) as a Pallas TPU kernel.

    NOTE: the zero-cost identity is simply `return x`; the Pallas copy kernel
    is kept so the op is expressed as a kernel, with input/output aliasing so
    a donated input incurs no extra HBM allocation.
    """
    if x.size == 0:
        return x                                   # nothing to copy
    if x.ndim == 0:
        return identity(x.reshape(1, 1)).reshape(())

    nbytes = x.size * x.dtype.itemsize
    if nbytes <= _SMALL_BYTES:
        # Small tensor: single full-array block in the original shape.
        return _copy_small(x)

    # Large tensor: lane-dense 2D view (contiguous reshape is free in XLA).
    n = x.size
    lanes = next((c for c in _LANE_CANDIDATES if n % c == 0), None)
    if lanes is not None:
        y2d = _copy_tiled_2d(x.reshape(n // lanes, lanes))
        return y2d.reshape(x.shape)

    # Rare fallback: element count not a multiple of 128 -> minimal flat pad
    # (< 1024 elements), tiled copy, slice back.
    lanes = 1024
    rows = -(-n // lanes)
    pad = rows * lanes - n
    x2d = jnp.pad(x.reshape(-1), (0, pad)).reshape(rows, lanes)
    y2d = _copy_tiled_2d(x2d)
    return y2d.reshape(-1)[:n].reshape(x.shape)


if __name__ == "__main__":
    key = jax.random.PRNGKey(0)

    # NCHW input, as PyTorch conv-style modules would receive (small path).
    x = jax.random.normal(key, (2, 4, 16, 16), dtype=jnp.float32)
    y = jax.block_until_ready(identity(x))
    assert y.shape == x.shape
    assert y.dtype == x.dtype
    assert bool(jnp.array_equal(y, x))

    # Also exercise the tiled large path (6 MiB f32 -> wide lane-dense blocks).
    x_big = jax.random.normal(jax.random.PRNGKey(1), (1024, 1536),
                              dtype=jnp.float32)
    y_big = jax.block_until_ready(identity(x_big))
    assert y_big.shape == x_big.shape
    assert bool(jnp.array_equal(y_big, x_big))

    print("KERNEL_OK")
</pallas_src>

<mosaic_0001>
module attributes {stable_mosaic.version = 11 : i64} {
  func.func @_identity_kernel(%arg0: memref<2x4x16x16xf32, #tpu.memory_space<vmem>>, %arg1: memref<2x4x16x16xf32, #tpu.memory_space<vmem>>) attributes {dimension_semantics = [], scalar_prefetch = 0 : i64, scratch_operands = 0 : i64, tpu.core_type = #tpu.core_type<tc>} {
    %c0 = arith.constant 0 : index
    %c0_0 = arith.constant 0 : index
    %c0_1 = arith.constant 0 : index
    %c0_2 = arith.constant 0 : index
    %0 = vector.load %arg0[%c0, %c0_0, %c0_1, %c0_2] : memref<2x4x16x16xf32, #tpu.memory_space<vmem>>, vector<2x4x16x16xf32>
    %c0_3 = arith.constant 0 : index
    %c0_4 = arith.constant 0 : index
    %c0_5 = arith.constant 0 : index
    %c0_6 = arith.constant 0 : index
    %1 = vector.load %arg1[%c0_3, %c0_4, %c0_5, %c0_6] : memref<2x4x16x16xf32, #tpu.memory_space<vmem>>, vector<2x4x16x16xf32>
    tpu.vector_store %arg1[%c0_3, %c0_4, %c0_5, %c0_6], %0 {strides = array<i32>} : memref<2x4x16x16xf32, #tpu.memory_space<vmem>>, vector<2x4x16x16xf32>,
    return
  }
}

</mosaic_0001>

<llo_original>
// kernel: tpu_custom_call.1
$region0: #{tpu_custom_call.1}
  #allocation0 [shape = 'u32[]', space=smem, size = 0x4, offset = 0x4, fixed_abs, tag = 'smem constant byte address 0x4 - core index']
  #allocation1 [shape = 'u32[144,128]{1,0:T(1,128)}', space=vmem, size = 0x12000, scoped, tag = 'internal scratch']
  %s0 = inlined_call_operand.hbm [shape: f32[2,4,16,16], index: 0, kind: input, shape index: {}, may-alias: {0,1}]
  %s1 = inlined_call_operand.hbm [shape: f32[2,4,16,16], index: 1, kind: output, shape index: {}, may-alias: {0,1}]
  %s2 = sld [smem:[#allocation0]]
  $region18: #{tpu_custom_call.1} parent=0
    _
  %s4 = ssub.s32 1, %s2
  %s5 = scalar_select 0, %s4, %s2
  $region1: #{tpu_custom_call.1} parent=0
    #allocation2 [shape = 'u8[65536]{0}', space=vmem, size = 0x10000, scoped, tag = 'input window, operand 0, single buffered']
    #allocation3 [shape = 's32[1]{0}', space=sflag, size = 0x4, scoped, tag = 'scoped memory for tpu_custom_call.1']
    #allocation4 [shape = 's32[1]{0}', space=sflag, size = 0x4, scoped, tag = 'scoped memory for tpu_custom_call.1']
    #allocation5 [shape = 'u8[65536]{0}', space=vmem, size = 0x10000, scoped, tag = 'output window, operand 0, single buffered']
    %6 = vsyncpa [#allocation3], 0
    %7 = vsyncpa [#allocation4], 0
    // Predicated region
    $region2: #{tpu_custom_call.1} parent=1 // pred_check
      _
    $region3: #{tpu_custom_call.1} parent=1 // pred_check_branch
      %9 = sbr.rel (0) target = $region5
    $region4: #{tpu_custom_call.1} parent=1 // pred_region
      %s11 = ssub.s32 2048, 2048
      %12 = vsyncadd [#allocation3], %s11
      %s13 = sshll.u32 [#allocation2], 4
      %s14 = int_to_ptr.vmem [resolvable:$true] %s13
      %19 = dma.hbm_to_vmem [thread:$0]  %s0, 2048, %s14, [#allocation3], 128, 128, 8
    $region5: #{tpu_custom_call.1} parent=1 // pred_fallthru
      _
    // Predicated region
    $region6: #{tpu_custom_call.1} parent=1 // pred_check
      _
    $region7: #{tpu_custom_call.1} parent=1 // pred_check_branch
      %21 = sbr.rel (0) target = $region9
    $region8: #{tpu_custom_call.1} parent=1 // pred_region
      %22 = dma.done [#allocation3], 2048
    $region9: #{tpu_custom_call.1} parent=1 // pred_fallthru
      _
    %v23 = vld [vmem:[#allocation2] sm:$0xff]
    %v24 = vld [vmem:[#allocation2 + $0x8] sm:$0xff]
    %v25 = vld [vmem:[#allocation2 + $0x10] sm:$0xff]
    %v26 = vld [vmem:[#allocation2 + $0x18] sm:$0xff]
    %v27 = vld [vmem:[#allocation2 + $0x20] sm:$0xff]
    %v28 = vld [vmem:[#allocation2 + $0x28] sm:$0xff]
    %v29 = vld [vmem:[#allocation2 + $0x30] sm:$0xff]
    %v30 = vld [vmem:[#allocation2 + $0x38] sm:$0xff]
    %v31 = vld [vmem:[#allocation2 + $0x40] sm:$0xff]
    %v32 = vld [vmem:[#allocation2 + $0x48] sm:$0xff]
    %v33 = vld [vmem:[#allocation2 + $0x50] sm:$0xff]
    %v34 = vld [vmem:[#allocation2 + $0x58] sm:$0xff]
    %v35 = vld [vmem:[#allocation2 + $0x60] sm:$0xff]
    %v36 = vld [vmem:[#allocation2 + $0x68] sm:$0xff]
    %v37 = vld [vmem:[#allocation2 + $0x70] sm:$0xff]
    %v38 = vld [vmem:[#allocation2 + $0x78] sm:$0xff]
    %vm39 = vcmask 130048
    %40 = vst.msk [vmem:[#allocation5] sm:$0xff] %vm39, %v23
    %41 = vst.msk [vmem:[#allocation5 + $0x8] sm:$0xff] %vm39, %v24
    %42 = vst.msk [vmem:[#allocation5 + $0x10] sm:$0xff] %vm39, %v25
    %43 = vst.msk [vmem:[#allocation5 + $0x18] sm:$0xff] %vm39, %v26
    %44 = vst.msk [vmem:[#allocation5 + $0x20] sm:$0xff] %vm39, %v27
    %45 = vst.msk [vmem:[#allocation5 + $0x28] sm:$0xff] %vm39, %v28
    %46 = vst.msk [vmem:[#allocation5 + $0x30] sm:$0xff] %vm39, %v29
    %47 = vst.msk [vmem:[#allocation5 + $0x38] sm:$0xff] %vm39, %v30
    %48 = vst.msk [vmem:[#allocation5 + $0x40] sm:$0xff] %vm39, %v31
    %49 = vst.msk [vmem:[#allocation5 + $0x48] sm:$0xff] %vm39, %v32
    %50 = vst.msk [vmem:[#allocation5 + $0x50] sm:$0xff] %vm39, %v33
    %51 = vst.msk [vmem:[#allocation5 + $0x58] sm:$0xff] %vm39, %v34
    %52 = vst.msk [vmem:[#allocation5 + $0x60] sm:$0xff] %vm39, %v35
    %53 = vst.msk [vmem:[#allocation5 + $0x68] sm:$0xff] %vm39, %v36
    %54 = vst.msk [vmem:[#allocation5 + $0x70] sm:$0xff] %vm39, %v37
    %55 = vst.msk [vmem:[#allocation5 + $0x78] sm:$0xff] %vm39, %v38
    // Predicated region
    $region10: #{tpu_custom_call.1} parent=1 // pred_check
      _
    $region11: #{tpu_custom_call.1} parent=1 // pred_check_branch
      %57 = sbr.rel (0) target = $region13
    $region12: #{tpu_custom_call.1} parent=1 // pred_region
      %s59 = ssub.s32 2048, 2048
      %60 = vsyncadd [#allocation4], %s59
      %s61 = sshll.u32 [#allocation5], 4
      %s62 = int_to_ptr.vmem [resolvable:$true] %s61
      %67 = dma.vmem_to_hbm [thread:$0]  %s62, 2048, %s1, [#allocation4], 128, 128, 8
    $region13: #{tpu_custom_call.1} parent=1 // pred_fallthru
      _
    // Predicated region
    $region14: #{tpu_custom_call.1} parent=1 // pred_check
      _
    $region15: #{tpu_custom_call.1} parent=1 // pred_check_branch
      %69 = sbr.rel (0) target = $region17
    $region16: #{tpu_custom_call.1} parent=1 // pred_region
      %70 = dma.done [#allocation4], 2048
    $region17: #{tpu_custom_call.1} parent=1 // pred_fallthru
      _
    %71 = vsyncpa [#allocation3], 1
    %72 = vsyncpa [#allocation4], 1

</llo_original>
